<compile_context>
chip_gen: v6e
topology: v6e:2x2x1
jax: 0.10.0
libtpu: 0.0.40
codegen_flags: <defaults>
</compile_context>

<pallas_src>
from functools import partial

import jax
import jax.numpy as jnp
from jax.experimental import pallas as pl
from jax.experimental.pallas import tpu as pltpu


def _aster_block_kernel(x_ref, w1_ref, w2_ref, bn_ref, o_ref, pad_ref, *, H, WC):
    # x_ref : (1, H, WC)   one image, (W, C) folded into the lane dimension
    # w1_ref: (WC, WC)     block-diagonal 1x1-conv weight
    # w2_ref: (3, WC, WC)  banded 3x3-conv weights, one per kernel row (kh)
    # bn_ref: (4, WC)      rows = [scale1, bias1, scale2, bias2], tiled over W
    # pad_ref: (H+2, WC)   H-halo scratch; rows 1..H hold the intermediate
    zero_row = jnp.zeros((1, WC), jnp.float32)
    pad_ref[0:1, :] = zero_row              # top halo
    pad_ref[H + 1:H + 2, :] = zero_row      # bottom halo

    bn = bn_ref[...]                        # (4, WC)
    x = x_ref[0].astype(jnp.float32)        # (H, WC)

    # ---- conv1x1 + BN1 + ReLU: single MXU matmul with K = WC ----
    y1 = jnp.dot(x, w1_ref[...], preferred_element_type=jnp.float32)
    y1 = jnp.maximum(y1 * bn[0] + bn[1], 0.0)
    pad_ref[1:H + 1, :] = y1

    # ---- conv3x3: three banded matmuls over H-shifted rows ----
    # (the W halo / zero padding is encoded inside each banded weight matrix)
    acc = jnp.dot(pad_ref[0:H, :], w2_ref[0], preferred_element_type=jnp.float32)
    acc = acc + jnp.dot(y1, w2_ref[1], preferred_element_type=jnp.float32)
    acc = acc + jnp.dot(pad_ref[2:H + 2, :], w2_ref[2],
                        preferred_element_type=jnp.float32)

    # ---- BN2 + residual add + ReLU; lane-dense (unmasked) store ----
    out = jnp.maximum(acc * bn[2] + bn[3] + x, 0.0)
    o_ref[0] = out.astype(o_ref.dtype)


def _build_blockdiag_w1(w1, W):
    """(Cin, Cout) 1x1-conv weight -> (W*Cin, W*Cout) block-diagonal matrix."""
    C, Co = w1.shape
    eye = jnp.eye(W, dtype=w1.dtype)
    bd = eye[:, :, None, None] * w1[None, None, :, :]          # (W, W, Cin, Cout)
    return bd.transpose(0, 2, 1, 3).reshape(W * C, W * Co)


def _build_banded_w2(w2_hwio, W):
    """(3, 3, Cin, Cout) HWIO 3x3 weights -> (3, W*Cin, W*Cout) banded matrices.

    band[kh, w_in*Cin+ci, w_out*Cout+co] = w2[kh, kw, ci, co], kw = w_in - w_out + 1,
    zero when |w_in - w_out| > 1.  Multiplying a flattened (w, c) feature row by this
    matrix performs the kw sweep of the 3x3 conv including W-boundary zero padding.
    """
    C, Co = w2_hwio.shape[2], w2_hwio.shape[3]
    w_in = jnp.arange(W)[:, None]
    w_out = jnp.arange(W)[None, :]
    diff = w_in - w_out                                         # = kw - 1
    valid = jnp.abs(diff) <= 1
    kw_idx = jnp.clip(diff + 1, 0, 2)                           # (W, W)
    blocks = w2_hwio[:, kw_idx]                                 # (3, W, W, Cin, Cout)
    blocks = jnp.where(valid[None, :, :, None, None], blocks, 0.0)
    return blocks.transpose(0, 1, 3, 2, 4).reshape(3, W * C, W * Co)


def aster_block_pallas(x_nchw, w1, w2, bn_params):
    """x_nchw: (N, C, H, W) float32; returns (N, C, H, W)."""
    N, C, H, W = x_nchw.shape
    WC = W * C

    # NCHW -> lane-dense (N, H, W*C). One transpose pass outside the kernel; keeping
    # the surrounding model channels-last would remove it.
    x_l = jnp.transpose(x_nchw, (0, 2, 3, 1)).reshape(N, H, WC)

    w1b = _build_blockdiag_w1(w1, W)                 # (WC, WC)
    w2b = _build_banded_w2(w2, W)                    # (3, WC, WC)
    bn_t = jnp.tile(bn_params, (1, W))               # (4, WC), index = w*C + c

    out_l = pl.pallas_call(
        partial(_aster_block_kernel, H=H, WC=WC),
        out_shape=jax.ShapeDtypeStruct((N, H, WC), x_l.dtype),
        grid_spec=pltpu.PrefetchScalarGridSpec(
            num_scalar_prefetch=0,
            grid=(N,),
            in_specs=[
                pl.BlockSpec((1, H, WC), lambda n: (n, 0, 0)),
                pl.BlockSpec((WC, WC), lambda n: (0, 0)),
                pl.BlockSpec((3, WC, WC), lambda n: (0, 0, 0)),
                pl.BlockSpec((4, WC), lambda n: (0, 0)),
            ],
            out_specs=pl.BlockSpec((1, H, WC), lambda n: (n, 0, 0)),
            scratch_shapes=[pltpu.VMEM((H + 2, WC), jnp.float32)],
        ),
        compiler_params=pltpu.CompilerParams(dimension_semantics=("parallel",)),
    )(x_l, w1b, w2b, bn_t)

    return jnp.transpose(out_l.reshape(N, H, W, C), (0, 3, 1, 2))


def aster_block_reference(x_nchw, w1, w2_hwio, bn_params):
    """Pure-JAX reference (same folded-BN eval semantics) for verification."""
    x = jnp.transpose(x_nchw, (0, 2, 3, 1))          # NHWC
    scale1, bias1, scale2, bias2 = bn_params
    y = jnp.einsum("nhwc,cd->nhwd", x, w1)
    y = jnp.maximum(y * scale1 + bias1, 0.0)
    y2 = jax.lax.conv_general_dilated(
        y, w2_hwio, window_strides=(1, 1), padding="SAME",
        dimension_numbers=("NHWC", "HWIO", "NHWC"),
    )
    out = jnp.maximum(y2 * scale2 + bias2 + x, 0.0)
    return jnp.transpose(out, (0, 3, 1, 2))


def make_params(key, C):
    """Deterministic synthetic parameters (inplanes == planes == C, stride=1)."""
    k1, k2, k3, k4, k5, k6 = jax.random.split(key, 6)
    w1 = jax.random.normal(k1, (C, C), jnp.float32) * 0.1          # (Cin, Cout)
    w2 = jax.random.normal(k2, (3, 3, C, C), jnp.float32) * 0.1    # HWIO
    eps = 1e-5
    gamma1 = 1.0 + 0.1 * jax.random.normal(k3, (C,), jnp.float32)
    beta1 = 0.1 * jax.random.normal(k4, (C,), jnp.float32)
    mean1 = 0.05 * jax.random.normal(k5, (C,), jnp.float32)
    var1 = 0.5 + jnp.abs(0.2 * jax.random.normal(k6, (C,), jnp.float32))
    gamma2 = 1.0 - 0.05 * gamma1
    beta2 = -0.5 * beta1
    mean2 = 0.02 * mean1
    var2 = 0.8 + 0.1 * var1
    scale1 = gamma1 / jnp.sqrt(var1 + eps)
    bias1 = beta1 - mean1 * scale1
    scale2 = gamma2 / jnp.sqrt(var2 + eps)
    bias2 = beta2 - mean2 * scale2
    bn_params = jnp.stack([scale1, bias1, scale2, bias2], axis=0)  # (4, C)
    return w1, w2, bn_params


if __name__ == "__main__":
    N, C, H, W = 2, 8, 16, 16          # W * C = 128 -> lane-dense folded layout
    key = jax.random.PRNGKey(0)
    kx, kp = jax.random.split(key)
    x = jax.random.normal(kx, (N, C, H, W), jnp.float32)
    w1, w2, bn_params = make_params(kp, C)

    fn = jax.jit(aster_block_pallas)
    out = jax.block_until_ready(fn(x, w1, w2, bn_params))

    ref = aster_block_reference(x, w1, w2, bn_params)
    assert out.shape == (N, C, H, W)
    assert jnp.allclose(out, ref, atol=2e-4, rtol=2e-4), "mismatch vs reference"

    print("KERNEL_OK")
</pallas_src>

<mosaic_0001>
module attributes {stable_mosaic.version = 11 : i64} {
  func.func @_aster_block_kernel(%arg0: i32, %arg1: memref<1x16x128xf32, #tpu.memory_space<vmem>>, %arg2: memref<128x128xf32, #tpu.memory_space<vmem>>, %arg3: memref<3x128x128xf32, #tpu.memory_space<vmem>>, %arg4: memref<4x128xf32, #tpu.memory_space<vmem>>, %arg5: memref<1x16x128xf32, #tpu.memory_space<vmem>>, %arg6: memref<18x128xf32, #tpu.memory_space<vmem>>) attributes {dimension_semantics = [#tpu.dimension_semantics<parallel>], iteration_bounds = array<i64: 2>, scalar_prefetch = 0 : i64, scratch_operands = 1 : i64, tpu.core_type = #tpu.core_type<tc>, window_params = [{transform_indices = @transform_0, window_bounds = array<i64: 1, 16, 128>}, {pipeline_mode = #tpu.pipeline_mode<synchronous>, transform_indices = @transform_1, window_bounds = array<i64: 128, 128>}, {pipeline_mode = #tpu.pipeline_mode<synchronous>, transform_indices = @transform_2, window_bounds = array<i64: 3, 128, 128>}, {pipeline_mode = #tpu.pipeline_mode<synchronous>, transform_indices = @transform_3, window_bounds = array<i64: 4, 128>}, {transform_indices = @transform_4, window_bounds = array<i64: 1, 16, 128>}]} {
    %cst = arith.constant 0.000000e+00 : f32
    %0 = vector.broadcast %cst : f32 to vector<1x128xf32>
    %c0 = arith.constant 0 : index
    %c0_0 = arith.constant 0 : index
    %1 = vector.load %arg6[%c0, %c0_0] : memref<18x128xf32, #tpu.memory_space<vmem>>, vector<1x128xf32>
    tpu.vector_store %arg6[%c0, %c0_0], %0 {strides = array<i32>} : memref<18x128xf32, #tpu.memory_space<vmem>>, vector<1x128xf32>,
    %c17 = arith.constant 17 : index
    %c0_1 = arith.constant 0 : index
    %2 = vector.load %arg6[%c17, %c0_1] : memref<18x128xf32, #tpu.memory_space<vmem>>, vector<1x128xf32>
    tpu.vector_store %arg6[%c17, %c0_1], %0 {strides = array<i32>} : memref<18x128xf32, #tpu.memory_space<vmem>>, vector<1x128xf32>,
    %c0_2 = arith.constant 0 : index
    %c0_3 = arith.constant 0 : index
    %3 = vector.load %arg4[%c0_2, %c0_3] : memref<4x128xf32, #tpu.memory_space<vmem>>, vector<4x128xf32>
    %c0_4 = arith.constant 0 : index
    %c0_5 = arith.constant 0 : index
    %c0_6 = arith.constant 0 : index
    %4 = vector.load %arg1[%c0_4, %c0_5, %c0_6] : memref<1x16x128xf32, #tpu.memory_space<vmem>>, vector<1x16x128xf32>
    %5 = vector.shape_cast %4 : vector<1x16x128xf32> to vector<16x128xf32>
    %c0_7 = arith.constant 0 : index
    %c0_8 = arith.constant 0 : index
    %6 = vector.load %arg2[%c0_7, %c0_8] : memref<128x128xf32, #tpu.memory_space<vmem>>, vector<128x128xf32>
    %cst_9 = arith.constant dense<0.000000e+00> : vector<16x128xf32>
    %7 = tpu.matmul %5, %6, %cst_9 {dimension_numbers = #tpu.dot_dimension_numbers<[1], [0], [0], [1], [0, 0, 1, 1], [], []>} : vector<16x128xf32>, vector<128x128xf32>, vector<16x128xf32> -> vector<16x128xf32>
    %8 = vector.extract_strided_slice %3 {offsets = [0, 0], sizes = [1, 128], strides = [1, 1]} : vector<4x128xf32> to vector<1x128xf32>
    %9 = vector.shape_cast %8 : vector<1x128xf32> to vector<128xf32>
    %10 = vector.shape_cast %9 : vector<128xf32> to vector<1x128xf32>
    %11 = vector.broadcast %10 : vector<1x128xf32> to vector<16x128xf32>
    %12 = arith.mulf %7, %11 : vector<16x128xf32>
    %13 = vector.extract_strided_slice %3 {offsets = [1, 0], sizes = [1, 128], strides = [1, 1]} : vector<4x128xf32> to vector<1x128xf32>
    %14 = vector.shape_cast %13 : vector<1x128xf32> to vector<128xf32>
    %15 = vector.shape_cast %14 : vector<128xf32> to vector<1x128xf32>
    %16 = vector.broadcast %15 : vector<1x128xf32> to vector<16x128xf32>
    %17 = arith.addf %12, %16 : vector<16x128xf32>
    %cst_10 = arith.constant 0.000000e+00 : f32
    %18 = vector.broadcast %cst_10 : f32 to vector<16x128xf32>
    %19 = arith.maximumf %17, %18 : vector<16x128xf32>
    %c1 = arith.constant 1 : index
    %c0_11 = arith.constant 0 : index
    %20 = vector.load %arg6[%c1, %c0_11] : memref<18x128xf32, #tpu.memory_space<vmem>>, vector<16x128xf32>
    tpu.vector_store %arg6[%c1, %c0_11], %19 {strides = array<i32>} : memref<18x128xf32, #tpu.memory_space<vmem>>, vector<16x128xf32>,
    %c0_12 = arith.constant 0 : index
    %c0_13 = arith.constant 0 : index
    %21 = vector.load %arg6[%c0_12, %c0_13] : memref<18x128xf32, #tpu.memory_space<vmem>>, vector<16x128xf32>
    %c0_14 = arith.constant 0 : index
    %c0_15 = arith.constant 0 : index
    %c0_16 = arith.constant 0 : index
    %22 = vector.load %arg3[%c0_14, %c0_15, %c0_16] : memref<3x128x128xf32, #tpu.memory_space<vmem>>, vector<1x128x128xf32>
    %23 = vector.shape_cast %22 : vector<1x128x128xf32> to vector<128x128xf32>
    %cst_17 = arith.constant dense<0.000000e+00> : vector<16x128xf32>
    %24 = tpu.matmul %21, %23, %cst_17 {dimension_numbers = #tpu.dot_dimension_numbers<[1], [0], [0], [1], [0, 0, 1, 1], [], []>} : vector<16x128xf32>, vector<128x128xf32>, vector<16x128xf32> -> vector<16x128xf32>
    %c1_18 = arith.constant 1 : index
    %c0_19 = arith.constant 0 : index
    %c0_20 = arith.constant 0 : index
    %25 = vector.load %arg3[%c1_18, %c0_19, %c0_20] : memref<3x128x128xf32, #tpu.memory_space<vmem>>, vector<1x128x128xf32>
    %26 = vector.shape_cast %25 : vector<1x128x128xf32> to vector<128x128xf32>
    %cst_21 = arith.constant dense<0.000000e+00> : vector<16x128xf32>
    %27 = tpu.matmul %19, %26, %cst_21 {dimension_numbers = #tpu.dot_dimension_numbers<[1], [0], [0], [1], [0, 0, 1, 1], [], []>} : vector<16x128xf32>, vector<128x128xf32>, vector<16x128xf32> -> vector<16x128xf32>
    %28 = arith.addf %24, %27 : vector<16x128xf32>
    %c2 = arith.constant 2 : index
    %c0_22 = arith.constant 0 : index
    %29 = vector.load %arg6[%c2, %c0_22] : memref<18x128xf32, #tpu.memory_space<vmem>>, vector<16x128xf32>
    %c2_23 = arith.constant 2 : index
    %c0_24 = arith.constant 0 : index
    %c0_25 = arith.constant 0 : index
    %30 = vector.load %arg3[%c2_23, %c0_24, %c0_25] : memref<3x128x128xf32, #tpu.memory_space<vmem>>, vector<1x128x128xf32>
    %31 = vector.shape_cast %30 : vector<1x128x128xf32> to vector<128x128xf32>
    %cst_26 = arith.constant dense<0.000000e+00> : vector<16x128xf32>
    %32 = tpu.matmul %29, %31, %cst_26 {dimension_numbers = #tpu.dot_dimension_numbers<[1], [0], [0], [1], [0, 0, 1, 1], [], []>} : vector<16x128xf32>, vector<128x128xf32>, vector<16x128xf32> -> vector<16x128xf32>
    %33 = arith.addf %28, %32 : vector<16x128xf32>
    %34 = vector.extract_strided_slice %3 {offsets = [2, 0], sizes = [1, 128], strides = [1, 1]} : vector<4x128xf32> to vector<1x128xf32>
    %35 = vector.shape_cast %34 : vector<1x128xf32> to vector<128xf32>
    %36 = vector.shape_cast %35 : vector<128xf32> to vector<1x128xf32>
    %37 = vector.broadcast %36 : vector<1x128xf32> to vector<16x128xf32>
    %38 = arith.mulf %33, %37 : vector<16x128xf32>
    %39 = vector.extract_strided_slice %3 {offsets = [3, 0], sizes = [1, 128], strides = [1, 1]} : vector<4x128xf32> to vector<1x128xf32>
    %40 = vector.shape_cast %39 : vector<1x128xf32> to vector<128xf32>
    %41 = vector.shape_cast %40 : vector<128xf32> to vector<1x128xf32>
    %42 = vector.broadcast %41 : vector<1x128xf32> to vector<16x128xf32>
    %43 = arith.addf %38, %42 : vector<16x128xf32>
    %44 = arith.addf %43, %5 : vector<16x128xf32>
    %cst_27 = arith.constant 0.000000e+00 : f32
    %45 = vector.broadcast %cst_27 : f32 to vector<16x128xf32>
    %46 = arith.maximumf %44, %45 : vector<16x128xf32>
    %c0_28 = arith.constant 0 : index
    %c0_29 = arith.constant 0 : index
    %c0_30 = arith.constant 0 : index
    %47 = vector.load %arg5[%c0_28, %c0_29, %c0_30] : memref<1x16x128xf32, #tpu.memory_space<vmem>>, vector<1x16x128xf32>
    %48 = vector.shape_cast %47 : vector<1x16x128xf32> to vector<16x128xf32>
    %49 = vector.shape_cast %46 : vector<16x128xf32> to vector<1x16x128xf32>
    tpu.vector_store %arg5[%c0_28, %c0_29, %c0_30], %49 {strides = array<i32>} : memref<1x16x128xf32, #tpu.memory_space<vmem>>, vector<1x16x128xf32>,
    return
  }
  func.func @transform_0(%arg0: i32) -> (i32, i32, i32) {
    %c0_i32 = arith.constant 0 : i32
    %c0_i32_0 = arith.constant 0 : i32
    %c0_i32_1 = arith.constant 0 : i32
    return %arg0, %c0_i32, %c0_i32_0 : i32, i32, i32
  }
  func.func @transform_1(%arg0: i32) -> (i32, i32) {
    %c0_i32 = arith.constant 0 : i32
    %c0_i32_0 = arith.constant 0 : i32
    %c0_i32_1 = arith.constant 0 : i32
    return %c0_i32, %c0_i32_0 : i32, i32
  }
  func.func @transform_2(%arg0: i32) -> (i32, i32, i32) {
    %c0_i32 = arith.constant 0 : i32
    %c0_i32_0 = arith.constant 0 : i32
    %c0_i32_1 = arith.constant 0 : i32
    %c0_i32_2 = arith.constant 0 : i32
    return %c0_i32, %c0_i32_0, %c0_i32_1 : i32, i32, i32
  }
  func.func @transform_3(%arg0: i32) -> (i32, i32) {
    %c0_i32 = arith.constant 0 : i32
    %c0_i32_0 = arith.constant 0 : i32
    %c0_i32_1 = arith.constant 0 : i32
    return %c0_i32, %c0_i32_0 : i32, i32
  }
  func.func @transform_4(%arg0: i32) -> (i32, i32, i32) {
    %c0_i32 = arith.constant 0 : i32
    %c0_i32_0 = arith.constant 0 : i32
    %c0_i32_1 = arith.constant 0 : i32
    return %arg0, %c0_i32, %c0_i32_0 : i32, i32, i32
  }
}

</mosaic_0001>

<llo_original>
// kernel: tile.9
$region0: #{tile.9}
  %s0 = inlined_call_operand.vmem [shape: f32[4,16,8], index: 0, kind: input, shape index: {}]
  %s1 = inlined_call_operand.vmem [shape: f32[4,128], index: 1, kind: output, shape index: {}]
  $region1: #{tile.9} parent=0
    #allocation0 [shape = 'u8[4096]{0}', space=vmem, size = 0x1000, scoped, tag = 'scoped mem for output reshape']
    %s2 = smov 3
    %v3 = vld [vmem:[%s0] ss:$16 sm:%s2]
    %s4 = smov 12
    %v5 = vld [vmem:[%s0] ss:$16 sm:%s4]
    %vm6 = vcmask 1043458
    %v7 = vsel %vm6, %v5, %v3
    %vm8 = vcmask 64512
    %9 = vst.msk [vmem:[#allocation0] sm:$0xf] %vm8, %v7
    %s10 = scalar_lea.vmem %s0, 15
    %s11 = smov 3
    %v12 = vld [vmem:[%s10] ss:$16 sm:%s11]
    %s13 = scalar_lea.vmem %s0, 15
    %s14 = smov 12
    %v15 = vld [vmem:[%s13] ss:$16 sm:%s14]
    %vm16 = vcmask 1043458
    %v17 = vsel %vm16, %v15, %v12
    %18 = vrot.lane.b32.xlu0 %v17, 120
    %v19 = vpop.permute.xlu0 %18
    %vm20 = vcmask 1048512
    %21 = vst.msk [vmem:[#allocation0] sm:$0xf] %vm20, %v19
    %s22 = scalar_lea.vmem %s0, 14
    %s23 = smov 3
    %v24 = vld [vmem:[%s22] ss:$16 sm:%s23]
    %s25 = scalar_lea.vmem %s0, 14
    %s26 = smov 12
    %v27 = vld [vmem:[%s25] ss:$16 sm:%s26]
    %vm28 = vcmask 1043458
    %v29 = vsel %vm28, %v27, %v24
    %30 = vrot.lane.b32.xlu0 %v29, 112
    %v31 = vpop.permute.xlu0 %30
    %vm32 = vcmask 982912
    %33 = vst.msk [vmem:[#allocation0] sm:$0xf] %vm32, %v31
    %s34 = scalar_lea.vmem %s0, 13
    %s35 = smov 3
    %v36 = vld [vmem:[%s34] ss:$16 sm:%s35]
    %s37 = scalar_lea.vmem %s0, 13
    %s38 = smov 12
    %v39 = vld [vmem:[%s37] ss:$16 sm:%s38]
    %vm40 = vcmask 1043458
    %v41 = vsel %vm40, %v39, %v36
    %42 = vrot.lane.b32.xlu0 %v41, 104
    %v43 = vpop.permute.xlu0 %42
    %vm44 = vcmask 917312
    %45 = vst.msk [vmem:[#allocation0] sm:$0xf] %vm44, %v43
    %s46 = scalar_lea.vmem %s0, 12
    %s47 = smov 3
    %v48 = vld [vmem:[%s46] ss:$16 sm:%s47]
    %s49 = scalar_lea.vmem %s0, 12
    %s50 = smov 12
    %v51 = vld [vmem:[%s49] ss:$16 sm:%s50]
    %vm52 = vcmask 1043458
    %v53 = vsel %vm52, %v51, %v48
    %54 = vrot.lane.b32.xlu0 %v53, 96
    %v55 = vpop.permute.xlu0 %54
    %vm56 = vcmask 851712
    %57 = vst.msk [vmem:[#allocation0] sm:$0xf] %vm56, %v55
    %s58 = scalar_lea.vmem %s0, 11
    %s59 = smov 3
    %v60 = vld [vmem:[%s58] ss:$16 sm:%s59]
    %s61 = scalar_lea.vmem %s0, 11
    %s62 = smov 12
    %v63 = vld [vmem:[%s61] ss:$16 sm:%s62]
    %vm64 = vcmask 1043458
    %v65 = vsel %vm64, %v63, %v60
    %66 = vrot.lane.b32.xlu0 %v65, 88
    %v67 = vpop.permute.xlu0 %66
    %vm68 = vcmask 786112
    %69 = vst.msk [vmem:[#allocation0] sm:$0xf] %vm68, %v67
    %s70 = scalar_lea.vmem %s0, 10
    %s71 = smov 3
    %v72 = vld [vmem:[%s70] ss:$16 sm:%s71]
    %s73 = scalar_lea.vmem %s0, 10
    %s74 = smov 12
    %v75 = vld [vmem:[%s73] ss:$16 sm:%s74]
    %vm76 = vcmask 1043458
    %v77 = vsel %vm76, %v75, %v72
    %78 = vrot.lane.b32.xlu0 %v77, 80
    %v79 = vpop.permute.xlu0 %78
    %vm80 = vcmask 720512
    %81 = vst.msk [vmem:[#allocation0] sm:$0xf] %vm80, %v79
    %s82 = scalar_lea.vmem %s0, 9
    %s83 = smov 3
    %v84 = vld [vmem:[%s82] ss:$16 sm:%s83]
    %s85 = scalar_lea.vmem %s0, 9
    %s86 = smov 12
    %v87 = vld [vmem:[%s85] ss:$16 sm:%s86]
    %vm88 = vcmask 1043458
    %v89 = vsel %vm88, %v87, %v84
    %90 = vrot.lane.b32.xlu0 %v89, 72
    %v91 = vpop.permute.xlu0 %90
    %vm92 = vcmask 654912
    %93 = vst.msk [vmem:[#allocation0] sm:$0xf] %vm92, %v91
    %s94 = scalar_lea.vmem %s0, 8
    %s95 = smov 3
    %v96 = vld [vmem:[%s94] ss:$16 sm:%s95]
    %s97 = scalar_lea.vmem %s0, 8
    %s98 = smov 12
    %v99 = vld [vmem:[%s97] ss:$16 sm:%s98]
    %vm100 = vcmask 1043458
    %v101 = vsel %vm100, %v99, %v96
    %102 = vrot.lane.b32.xlu0 %v101, 64
    %v103 = vpop.permute.xlu0 %102
    %vm104 = vcmask 589312
    %105 = vst.msk [vmem:[#allocation0] sm:$0xf] %vm104, %v103
    %s106 = scalar_lea.vmem %s0, 7
    %s107 = smov 3
    %v108 = vld [vmem:[%s106] ss:$16 sm:%s107]
    %s109 = scalar_lea.vmem %s0, 7
    %s110 = smov 12
    %v111 = vld [vmem:[%s109] ss:$16 sm:%s110]
    %vm112 = vcmask 1043458
    %v113 = vsel %vm112, %v111, %v108
    %114 = vrot.lane.b32.xlu0 %v113, 56
    %v115 = vpop.permute.xlu0 %114
    %vm116 = vcmask 523712
    %117 = vst.msk [vmem:[#allocation0] sm:$0xf] %vm116, %v115
    %s118 = scalar_lea.vmem %s0, 6
    %s119 = smov 3
    %v120 = vld [vmem:[%s118] ss:$16 sm:%s119]
    %s121 = scalar_lea.vmem %s0, 6
    %s122 = smov 12
    %v123 = vld [vmem:[%s121] ss:$16 sm:%s122]
    %vm124 = vcmask 1043458
    %v125 = vsel %vm124, %v123, %v120
    %126 = vrot.lane.b32.xlu0 %v125, 48
    %v127 = vpop.permute.xlu0 %126
    %vm128 = vcmask 458112
    %129 = vst.msk [vmem:[#allocation0] sm:$0xf] %vm128, %v127
    %s130 = scalar_lea.vmem %s0, 5
    %s131 = smov 3
    %v132 = vld [vmem:[%s130] ss:$16 sm:%s131]
    %s133 = scalar_lea.vmem %s0, 5
    %s134 = smov 12
    %v135 = vld [vmem:[%s133] ss:$16 sm:%s134]
    %vm136 = vcmask 1043458
    %v137 = vsel %vm136, %v135, %v132
    %138 = vrot.lane.b32.xlu0 %v137, 40
    %v139 = vpop.permute.xlu0 %138
    %vm140 = vcmask 392512
    %141 = vst.msk [vmem:[#allocation0] sm:$0xf] %vm140, %v139
    %s142 = scalar_lea.vmem %s0, 4
    %s143 = smov 3
    %v144 = vld [vmem:[%s142] ss:$16 sm:%s143]
    %s145 = scalar_lea.vmem %s0, 4
    %s146 = smov 12
    %v147 = vld [vmem:[%s145] ss:$16 sm:%s146]
    %vm148 = vcmask 1043458
    %v149 = vsel %vm148, %v147, %v144
    %150 = vrot.lane.b32.xlu0 %v149, 32
    %v151 = vpop.permute.xlu0 %150
    %vm152 = vcmask 326912
    %153 = vst.msk [vmem:[#allocation0] sm:$0xf] %vm152, %v151
    %s154 = scalar_lea.vmem %s0, 3
    %s155 = smov 3
    %v156 = vld [vmem:[%s154] ss:$16 sm:%s155]
    %s157 = scalar_lea.vmem %s0, 3
    %s158 = smov 12
    %v159 = vld [vmem:[%s157] ss:$16 sm:%s158]
    %vm160 = vcmask 1043458
    %v161 = vsel %vm160, %v159, %v156
    %162 = vrot.lane.b32.xlu0 %v161, 24
    %v163 = vpop.permute.xlu0 %162
    %vm164 = vcmask 261312
    %165 = vst.msk [vmem:[#allocation0] sm:$0xf] %vm164, %v163
    %s166 = scalar_lea.vmem %s0, 2
    %s167 = smov 3
    %v168 = vld [vmem:[%s166] ss:$16 sm:%s167]
    %s169 = scalar_lea.vmem %s0, 2
    %s170 = smov 12
    %v171 = vld [vmem:[%s169] ss:$16 sm:%s170]
    %vm172 = vcmask 1043458
    %v173 = vsel %vm172, %v171, %v168
    %174 = vrot.lane.b32.xlu0 %v173, 16
    %v175 = vpop.permute.xlu0 %174
    %vm176 = vcmask 195712
    %177 = vst.msk [vmem:[#allocation0] sm:$0xf] %vm176, %v175
    %s178 = scalar_lea.vmem %s0, 1
    %s179 = smov 3
    %v180 = vld [vmem:[%s178] ss:$16 sm:%s179]
    %s181 = scalar_lea.vmem %s0, 1
    %s182 = smov 12
    %v183 = vld [vmem:[%s181] ss:$16 sm:%s182]
    %vm184 = vcmask 1043458
    %v185 = vsel %vm184, %v183, %v180
    %186 = vrot.lane.b32.xlu0 %v185, 8
    %v187 = vpop.permute.xlu0 %186
    %vm188 = vcmask 130112
    %189 = vst.msk [vmem:[#allocation0] sm:$0xf] %vm188, %v187
    %s191 = sshll.u32 1, 4
    %s192 = ssub.s32 %s191, 1
    %v194 = vld [vmem:[#allocation0] sm:%s192]
    %s195 = sshll.u32 1, 4
    %s196 = ssub.s32 %s195, 1
    %197 = vst [vmem:[%s1] sm:%s196] %v194

// kernel: aster_block_pallas.1
$region0: #{aster_block_pallas.1}
  #allocation0 [shape = 'u32[]', space=smem, size = 0x4, offset = 0x4, fixed_abs, tag = 'smem constant byte address 0x4 - core index']
  #allocation1 [shape = 'u32[144,128]{1,0:T(1,128)}', space=vmem, size = 0x12000, scoped, tag = 'internal scratch']
  #allocation2 [shape = 'f32[18,128]{1,0:T(8,128)}', space=vmem, size = 0x3000, scoped, tag = 'scratch operand']
  %s0 = inlined_call_operand.vmem [shape: f32[2,16,128], index: 0, kind: input, shape index: {}]
  %s1 = inlined_call_operand.vmem [shape: f32[128,128], index: 1, kind: input, shape index: {}]
  %s2 = inlined_call_operand.vmem [shape: f32[3,128,128], index: 2, kind: input, shape index: {}]
  %s3 = inlined_call_operand.vmem [shape: f32[4,128], index: 3, kind: input, shape index: {}]
  %s4 = inlined_call_operand.vmem [shape: f32[2,16,128], index: 4, kind: output, shape index: {}]
  %s5 = sld [smem:[#allocation0]]
  $region49: #{aster_block_pallas.1} parent=0
    _
  %s7 = ssub.s32 1, %s5
  %s8 = scalar_select 0, %s7, %s5
  loop: start=0, step=1, limit=4
  $region2: #{aster_block_pallas.1} parent=0 // loop_pre_header
    _
  $region3: #{aster_block_pallas.1} parent=0 // loop_header
    %s10 = sphi 0, %s14
    %p11 = scmp.ge.s32.totalorder %s10, 4
    %s20 = sphi 0, %s22
    %s23 = sphi 0, %s20
    %s24 = sphi 0, %s23
    %s40 = sphi 0, %s24
    %s44 = sphi 0, %s44
    %s46 = sphi 0, %s44
    %s47 = sphi 0, %s46
    %s61 = sphi 0, %s47
    %s65 = sphi 0, %s65
    %s67 = sphi 0, %s65
    %s68 = sphi 0, %s67
    %s82 = sphi 0, %s68
    %s86 = sphi 0, %s86
    %s88 = sphi 0, %s86
    %s89 = sphi 0, %s88
    %s103 = sphi 0, %s89
    %s109 = sphi 0, %s111
    %s112 = sphi 0, %s109
    %s113 = sphi 0, %s112
    %s129 = sphi 0, %s113
  $region4: #{aster_block_pallas.1} parent=0 // loop_header_branch
    %13 = sbr.rel (%p11) target = $region8
  $region5: #{aster_block_pallas.1} parent=0 // loop_body
    %s15 = ssub.s32 %s10, 1
    %s16 = ssub.s32 %s10, 2
    %s17 = sadd.s32 %s10, 1
    %s18 = ssub.s32 %s10, %s17
    %p19 = scmp.eq.s32.totalorder %s18, 0
    %s21 = sadd.s32 %s20, 1
    %s22 = scalar_select %p19, %s20, %s21
    %p25 = pneg %p19
    %p26 = scmp.eq.s32.totalorder %s10, 1
    %p27 = por %p25, %p26
    %p28 = scmp.ne.s32.totalorder %s20, %s23
    %p29 = scmp.eq.s32.totalorder %s10, 0
    %p30 = por %p28, %p29
    %p31 = scmp.ne.s32.totalorder %s20, %s23
    %p32 = scmp.eq.s32.totalorder %s15, 1
    %p33 = por %p31, %p32
    %p34 = scmp.ne.s32.totalorder %s23, %s24
    %p35 = scmp.eq.s32.totalorder %s15, 0
    %p36 = por %p34, %p35
    %p37 = scmp.ne.s32.totalorder %s23, %s24
    %p38 = scmp.eq.s32.totalorder %s16, 1
    %p39 = por %p37, %p38
    %p41 = scmp.ne.s32.totalorder %s24, %s40
    %p42 = scmp.eq.s32.totalorder %s16, 0
    %p43 = por %p41, %p42
    %s45 = sadd.s32 %s44, 1
    %p48 = scmp.eq.s32.totalorder %s10, 1
    %p49 = scmp.ne.s32.totalorder %s44, %s46
    %p50 = scmp.eq.s32.totalorder %s10, 0
    %p51 = por %p49, %p50
    %p52 = scmp.ne.s32.totalorder %s44, %s46
    %p53 = scmp.eq.s32.totalorder %s15, 1
    %p54 = por %p52, %p53
    %p55 = scmp.ne.s32.totalorder %s46, %s47
    %p56 = scmp.eq.s32.totalorder %s15, 0
    %p57 = por %p55, %p56
    %p58 = scmp.ne.s32.totalorder %s46, %s47
    %p59 = scmp.eq.s32.totalorder %s16, 1
    %p60 = por %p58, %p59
    %p62 = scmp.ne.s32.totalorder %s47, %s61
    %p63 = scmp.eq.s32.totalorder %s16, 0
    %p64 = por %p62, %p63
    %s66 = sadd.s32 %s65, 1
    %p69 = scmp.eq.s32.totalorder %s10, 1
    %p70 = scmp.ne.s32.totalorder %s65, %s67
    %p71 = scmp.eq.s32.totalorder %s10, 0
    %p72 = por %p70, %p71
    %p73 = scmp.ne.s32.totalorder %s65, %s67
    %p74 = scmp.eq.s32.totalorder %s15, 1
    %p75 = por %p73, %p74
    %p76 = scmp.ne.s32.totalorder %s67, %s68
    %p77 = scmp.eq.s32.totalorder %s15, 0
    %p78 = por %p76, %p77
    %p79 = scmp.ne.s32.totalorder %s67, %s68
    %p80 = scmp.eq.s32.totalorder %s16, 1
    %p81 = por %p79, %p80
    %p83 = scmp.ne.s32.totalorder %s68, %s82
    %p84 = scmp.eq.s32.totalorder %s16, 0
    %p85 = por %p83, %p84
    %s87 = sadd.s32 %s86, 1
    %p90 = scmp.eq.s32.totalorder %s10, 1
    %p91 = scmp.ne.s32.totalorder %s86, %s88
    %p92 = scmp.eq.s32.totalorder %s10, 0
    %p93 = por %p91, %p92
    %p94 = scmp.ne.s32.totalorder %s86, %s88
    %p95 = scmp.eq.s32.totalorder %s15, 1
    %p96 = por %p94, %p95
    %p97 = scmp.ne.s32.totalorder %s88, %s89
    %p98 = scmp.eq.s32.totalorder %s15, 0
    %p99 = por %p97, %p98
    %p100 = scmp.ne.s32.totalorder %s88, %s89
    %p101 = scmp.eq.s32.totalorder %s16, 1
    %p102 = por %p100, %p101
    %p104 = scmp.ne.s32.totalorder %s89, %s103
    %p105 = scmp.eq.s32.totalorder %s16, 0
    %p106 = por %p104, %p105
    %s107 = ssub.s32 %s10, %s17
    %p108 = scmp.eq.s32.totalorder %s107, 0
    %s110 = sadd.s32 %s109, 1
    %s111 = scalar_select %p108, %s109, %s110
    %p114 = pneg %p108
    %p115 = scmp.eq.s32.totalorder %s10, 1
    %p116 = por %p114, %p115
    %p117 = scmp.ne.s32.totalorder %s109, %s112
    %p118 = scmp.eq.s32.totalorder %s10, 0
    %p119 = por %p117, %p118
    %p120 = scmp.ne.s32.totalorder %s109, %s112
    %p121 = scmp.eq.s32.totalorder %s15, 1
    %p122 = por %p120, %p121
    %p123 = scmp.ne.s32.totalorder %s112, %s113
    %p124 = scmp.eq.s32.totalorder %s15, 0
    %p125 = por %p123, %p124
    %p126 = scmp.ne.s32.totalorder %s112, %s113
    %p127 = scmp.eq.s32.totalorder %s16, 1
    %p128 = por %p126, %p127
    %p130 = scmp.ne.s32.totalorder %s113, %s129
    %p131 = scmp.eq.s32.totalorder %s16, 0
    %p132 = por %p130, %p131
    %p133 = scmp.le.s32.totalorder 1, %s10
    %p134 = scmp.lt.s32.totalorder %s10, 3
    %p135 = pnand %p133, %p134
    %p136 = pneg %p135
    // Predicated region
    $region9: #{aster_block_pallas.1} parent=5 // pred_check
      _
    $region10: #{aster_block_pallas.1} parent=5 // pred_check_branch
      %138 = sbr.rel (%p135) target = $region12
    $region11: #{aster_block_pallas.1} parent=5 // pred_region
      %s139 = ssub.s32 %s10, 1
      // Predicated region
      $region13: #{aster_block_pallas.1} parent=11 // pred_check
        %p140 = pneg %p57
      $region14: #{aster_block_pallas.1} parent=11 // pred_check_branch
        %142 = sbr.rel (%p140) target = $region16
      $region15: #{aster_block_pallas.1} parent=11 // pred_region
        _
      $region16: #{aster_block_pallas.1} parent=11 // pred_fallthru
        _
      // Predicated region
      $region17: #{aster_block_pallas.1} parent=11 // pred_check
        %p143 = pneg %p78
      $region18: #{aster_block_pallas.1} parent=11 // pred_check_branch
        %145 = sbr.rel (%p143) target = $region20
      $region19: #{aster_block_pallas.1} parent=11 // pred_region
        _
      $region20: #{aster_block_pallas.1} parent=11 // pred_fallthru
        _
      // Predicated region
      $region21: #{aster_block_pallas.1} parent=11 // pred_check
        %p146 = pneg %p99
      $region22: #{aster_block_pallas.1} parent=11 // pred_check_branch
        %148 = sbr.rel (%p146) target = $region24
      $region23: #{aster_block_pallas.1} parent=11 // pred_region
        _
      $region24: #{aster_block_pallas.1} parent=11 // pred_fallthru
        _
    $region12: #{aster_block_pallas.1} parent=5 // pred_fallthru
      _
    %p149 = scmp.lt.s32.totalorder %s10, 2
    // Predicated region
    $region25: #{aster_block_pallas.1} parent=5 // pred_check
      %p150 = pneg %p149
    $region26: #{aster_block_pallas.1} parent=5 // pred_check_branch
      %152 = sbr.rel (%p150) target = $region28
    $region27: #{aster_block_pallas.1} parent=5 // pred_region
      // Predicated region
      $region29: #{aster_block_pallas.1} parent=27 // pred_check
        %p153 = pneg %p30
      $region30: #{aster_block_pallas.1} parent=27 // pred_check_branch
        %155 = sbr.rel (%p153) target = $region32
      $region31: #{aster_block_pallas.1} parent=27 // pred_region
        %p156 = scmp.lt.s32.totalorder %s10, 1
        %s157 = scalar_select %p156, %s10, 1
        %s158 = smul.addr %s157, 2
        %s159 = smul.addr %s158, 8
        %s160 = scalar_lea.vmem %s0, %s159
      $region32: #{aster_block_pallas.1} parent=27 // pred_fallthru
        _
    $region28: #{aster_block_pallas.1} parent=5 // pred_fallthru
      _
    %p161 = scmp.le.s32.totalorder 1, %s10
    %p162 = scmp.lt.s32.totalorder %s10, 3
    %p163 = pnand %p161, %p162
    %p164 = pneg %p163
    // Predicated region
    $region33: #{aster_block_pallas.1} parent=5 // pred_check
      _
    $region34: #{aster_block_pallas.1} parent=5 // pred_check_branch
      %166 = sbr.rel (%p163) target = $region36
    $region35: #{aster_block_pallas.1} parent=5 // pred_region
      %s167 = ssub.s32 %s10, 1
      %p168 = scmp.lt.s32.totalorder %s15, 1
      %s169 = scalar_select %p168, %s15, 1
      %s170 = smul.addr %s169, 2
      %s171 = smul.addr %s170, 8
      %s172 = scalar_lea.vmem %s0, %s171
      %p173 = pneg %p36
      %p174 = pneg %p33
      %p175 = pneg %p57
      %p176 = pneg %p54
      %p177 = pneg %p78
      %p178 = pneg %p75
      %p179 = pneg %p99
      %p180 = pneg %p96
      %p181 = pneg %p125
      %p182 = pneg %p122
      %p183 = scmp.lt.s32.totalorder %s15, 1
      %s184 = scalar_select %p183, %s15, 1
      %s185 = smul.addr %s184, 2
      %s186 = smul.addr %s185, 8
      %s187 = scalar_lea.vmem %s4, %s186
      %p188 = scmp.lt.s32.totalorder %s15, 1
      %s189 = scalar_select %p188, %s15, 1
      %s190 = smul.addr %s189, 2
      %s191 = smul.addr %s190, 8
      %s192 = scalar_lea.vmem %s0, %s191
      %p193 = scmp.lt.s32.totalorder %s15, 1
      %s194 = scalar_select %p193, %s15, 1
      %s195 = smul.addr %s194, 2
      %s196 = smul.addr %s195, 8
      %s197 = scalar_lea.vmem %s4, %s196
      %198 = vst [vmem:[#allocation2] sm:$0x1] 0.0
      %199 = vst [vmem:[#allocation2 + $0x11] sm:$0x1] 0.0
      %v200 = vld [vmem:[%s3] sm:$0xf]
      %v201 = vld [vmem:[%s192] sm:$0xff]
      %v202 = vld [vmem:[%s192 + $0x8] sm:$0xff]
      %v203 = vld [vmem:[%s1] sm:$0xff]
      %v204 = vld [vmem:[%s1 + $0x8] sm:$0xff]
      %v205 = vld [vmem:[%s1 + $0x10] sm:$0xff]
      %v206 = vld [vmem:[%s1 + $0x18] sm:$0xff]
      %v207 = vld [vmem:[%s1 + $0x20] sm:$0xff]
      %v208 = vld [vmem:[%s1 + $0x28] sm:$0xff]
      %v209 = vld [vmem:[%s1 + $0x30] sm:$0xff]
      %v210 = vld [vmem:[%s1 + $0x38] sm:$0xff]
      %v211 = vld [vmem:[%s1 + $0x40] sm:$0xff]
      %v212 = vld [vmem:[%s1 + $0x48] sm:$0xff]
      %v213 = vld [vmem:[%s1 + $0x50] sm:$0xff]
      %v214 = vld [vmem:[%s1 + $0x58] sm:$0xff]
      %v215 = vld [vmem:[%s1 + $0x60] sm:$0xff]
      %v216 = vld [vmem:[%s1 + $0x68] sm:$0xff]
      %v217 = vld [vmem:[%s1 + $0x70] sm:$0xff]
      %v218 = vld [vmem:[%s1 + $0x78] sm:$0xff]
      %219 = vmatprep.subr.mxu0 0.0
      %220 = vmatpush1.msra.mxu0 %v218
      %221 = vmatprep.subr.mxu0 0.0
      %222 = vmatpush1.msra.mxu0 %v217
      %223 = vmatprep.subr.mxu0 0.0
      %224 = vmatpush1.msra.mxu0 %v216
      %225 = vmatprep.subr.mxu0 0.0
      %226 = vmatpush1.msra.mxu0 %v215
      %227 = vmatprep.subr.mxu0 0.0
      %228 = vmatpush1.msra.mxu0 %v214
      %229 = vmatprep.subr.mxu0 0.0
      %230 = vmatpush1.msra.mxu0 %v213
      %231 = vmatprep.subr.mxu0 0.0
      %232 = vmatpush1.msra.mxu0 %v212
      %233 = vmatprep.subr.mxu0 0.0
      %234 = vmatpush1.msra.mxu0 %v211
      %235 = vmatprep.subr.mxu0 0.0
      %236 = vmatpush1.msra.mxu0 %v210
      %237 = vmatprep.subr.mxu0 0.0
      %238 = vmatpush1.msra.mxu0 %v209
      %239 = vmatprep.subr.mxu0 0.0
      %240 = vmatpush1.msra.mxu0 %v208
      %241 = vmatprep.subr.mxu0 0.0
      %242 = vmatpush1.msra.mxu0 %v207
      %243 = vmatprep.subr.mxu0 0.0
      %244 = vmatpush1.msra.mxu0 %v206
      %245 = vmatprep.subr.mxu0 0.0
      %246 = vmatpush1.msra.mxu0 %v205
      %247 = vmatprep.subr.mxu0 0.0
      %248 = vmatpush1.msra.mxu0 %v204
      %249 = vmatprep.subr.mxu0 0.0
      %250 = vmatpush1.msra.mxu0 %v203
      %251 = vmatprep.subr.mxu0 0.0
      %252 = vmatpush2.msra.mxu0 0.0
      %253 = vmatprep.subr.mxu0 0.0
      %254 = vmatpush2.msra.mxu0 0.0
      %255 = vmatprep.subr.mxu0 0.0
      %256 = vmatpush2.msra.mxu0 0.0
      %257 = vmatprep.subr.mxu0 0.0
      %258 = vmatpush2.msra.mxu0 0.0
      %259 = vmatprep.subr.mxu0 0.0
      %260 = vmatpush2.msra.mxu0 0.0
      %261 = vmatprep.subr.mxu0 0.0
      %262 = vmatpush2.msra.mxu0 0.0
      %263 = vmatprep.subr.mxu0 0.0
      %264 = vmatpush2.msra.mxu0 0.0
      %265 = vmatprep.subr.mxu0 0.0
      %266 = vmatpush2.msra.mxu0 0.0
      %267 = vmatprep.subr.mxu0 0.0
      %268 = vmatpush2.msra.mxu0 0.0
      %269 = vmatprep.subr.mxu0 0.0
      %270 = vmatpush2.msra.mxu0 0.0
      %271 = vmatprep.subr.mxu0 0.0
      %272 = vmatpush2.msra.mxu0 0.0
      %273 = vmatprep.subr.mxu0 0.0
      %274 = vmatpush2.msra.mxu0 0.0
      %275 = vmatprep.subr.mxu0 0.0
      %276 = vmatpush2.msra.mxu0 0.0
      %277 = vmatprep.subr.mxu0 0.0
      %278 = vmatpush2.msra.mxu0 0.0
      %279 = vmatprep.subr.mxu0 0.0
      %280 = vmatpush2.msra.mxu0 0.0
      %281 = vmatprep.subr.mxu0 0.0
      %282 = vmatpush2.msra.mxu0 0.0
      %283 = vmatprep.mubr.f32.mxu0 0.0
      %284 = vmatmul.mubr.f32.gmra.mxu0 %v201
      %v285 = vpop.f32.mrf.mxu0
      %v286 = vadd.f32 0.0, %v285
      %v287 = vpop.f32.mrf.mxu0
      %288 = vmatprep.mubr.f32.mxu0 0.0
      %289 = vmatmul.mubr.f32.gmra.mxu0 %v202
      %v290 = vpop.f32.mrf.mxu0
      %v291 = vadd.f32 0.0, %v290
      %v292 = vpop.f32.mrf.mxu0
      %293 = vdwg.mxu0
      %v294 = vlaneseq
      %v295 = vshrl.u32 %v294, 7
      %v296 = vsub.s32 0, %v295
      %v297 = vrot.slane %v200, %v296
      %v298 = vmul.f32 %v286, %v297
      %v299 = vmul.f32 %v291, %v297
      %v300 = vlaneseq
      %v301 = vshrl.u32 %v300, 7
      %v302 = vsub.s32 1, %v301
      %v303 = vrot.slane %v200, %v302
      %v304 = vadd.f32 %v298, %v303
      %v305 = vadd.f32 %v299, %v303
      %v306 = vmax.f32 %v304, 0.0
      %v307 = vmax.f32 %v305, 0.0
      %308 = vst [vmem:[#allocation2 + $0x1] sm:$0xff] %v306
      %309 = vst [vmem:[#allocation2 + $0x9] sm:$0xff] %v307
      %v310 = vld [vmem:[#allocation2] sm:$0xff]
      %v311 = vld [vmem:[#allocation2 + $0x8] sm:$0xff]
      %v312 = vld [vmem:[%s2] sm:$0xff]
      %v313 = vld [vmem:[%s2 + $0x8] sm:$0xff]
      %v314 = vld [vmem:[%s2 + $0x10] sm:$0xff]
      %v315 = vld [vmem:[%s2 + $0x18] sm:$0xff]
      %v316 = vld [vmem:[%s2 + $0x20] sm:$0xff]
      %v317 = vld [vmem:[%s2 + $0x28] sm:$0xff]
      %v318 = vld [vmem:[%s2 + $0x30] sm:$0xff]
      %v319 = vld [vmem:[%s2 + $0x38] sm:$0xff]
      %v320 = vld [vmem:[%s2 + $0x40] sm:$0xff]
      %v321 = vld [vmem:[%s2 + $0x48] sm:$0xff]
      %v322 = vld [vmem:[%s2 + $0x50] sm:$0xff]
      %v323 = vld [vmem:[%s2 + $0x58] sm:$0xff]
      %v324 = vld [vmem:[%s2 + $0x60] sm:$0xff]
      %v325 = vld [vmem:[%s2 + $0x68] sm:$0xff]
      %v326 = vld [vmem:[%s2 + $0x70] sm:$0xff]
      %v327 = vld [vmem:[%s2 + $0x78] sm:$0xff]
      %s328 = scalar_lea.vmem %s2, 128
      %v329 = vld [vmem:[%s328] sm:$0xff]
      %v330 = vld [vmem:[%s328 + $0x8] sm:$0xff]
      %v331 = vld [vmem:[%s328 + $0x10] sm:$0xff]
      %v332 = vld [vmem:[%s328 + $0x18] sm:$0xff]
      %v333 = vld [vmem:[%s328 + $0x20] sm:$0xff]
      %v334 = vld [vmem:[%s328 + $0x28] sm:$0xff]
      %v335 = vld [vmem:[%s328 + $0x30] sm:$0xff]
      %v336 = vld [vmem:[%s328 + $0x38] sm:$0xff]
      %v337 = vld [vmem:[%s328 + $0x40] sm:$0xff]
      %v338 = vld [vmem:[%s328 + $0x48] sm:$0xff]
      %v339 = vld [vmem:[%s328 + $0x50] sm:$0xff]
      %v340 = vld [vmem:[%s328 + $0x58] sm:$0xff]
      %v341 = vld [vmem:[%s328 + $0x60] sm:$0xff]
      %v342 = vld [vmem:[%s328 + $0x68] sm:$0xff]
      %v343 = vld [vmem:[%s328 + $0x70] sm:$0xff]
      %v344 = vld [vmem:[%s328 + $0x78] sm:$0xff]
      %345 = vmatprep.subr.mxu0 0.0
      %346 = vmatpush1.msra.mxu0 %v344
      %347 = vmatprep.subr.mxu0 0.0
      %348 = vmatpush1.msra.mxu0 %v343
      %349 = vmatprep.subr.mxu0 0.0
      %350 = vmatpush1.msra.mxu0 %v342
      %351 = vmatprep.subr.mxu0 0.0
      %352 = vmatpush1.msra.mxu0 %v341
      %353 = vmatprep.subr.mxu0 0.0
      %354 = vmatpush1.msra.mxu0 %v340
      %355 = vmatprep.subr.mxu0 0.0
      %356 = vmatpush1.msra.mxu0 %v339
      %357 = vmatprep.subr.mxu0 0.0
      %358 = vmatpush1.msra.mxu0 %v338
      %359 = vmatprep.subr.mxu0 0.0
      %360 = vmatpush1.msra.mxu0 %v337
      %361 = vmatprep.subr.mxu0 0.0
      %362 = vmatpush1.msra.mxu0 %v336
      %363 = vmatprep.subr.mxu0 0.0
      %364 = vmatpush1.msra.mxu0 %v335
      %365 = vmatprep.subr.mxu0 0.0
      %366 = vmatpush1.msra.mxu0 %v334
      %367 = vmatprep.subr.mxu0 0.0
      %368 = vmatpush1.msra.mxu0 %v333
      %369 = vmatprep.subr.mxu0 0.0
      %370 = vmatpush1.msra.mxu0 %v332
      %371 = vmatprep.subr.mxu0 0.0
      %372 = vmatpush1.msra.mxu0 %v331
      %373 = vmatprep.subr.mxu0 0.0
      %374 = vmatpush1.msra.mxu0 %v330
      %375 = vmatprep.subr.mxu0 0.0
      %376 = vmatpush1.msra.mxu0 %v329
      %377 = vmatprep.subr.mxu0 0.0
      %378 = vmatpush2.msra.mxu0 0.0
      %379 = vmatprep.subr.mxu0 0.0
      %380 = vmatpush2.msra.mxu0 0.0
      %381 = vmatprep.subr.mxu0 0.0
      %382 = vmatpush2.msra.mxu0 0.0
      %383 = vmatprep.subr.mxu0 0.0
      %384 = vmatpush2.msra.mxu0 0.0
      %385 = vmatprep.subr.mxu0 0.0
      %386 = vmatpush2.msra.mxu0 0.0
      %387 = vmatprep.subr.mxu0 0.0
      %388 = vmatpush2.msra.mxu0 0.0
      %389 = vmatprep.subr.mxu0 0.0
      %390 = vmatpush2.msra.mxu0 0.0
      %391 = vmatprep.subr.mxu0 0.0
      %392 = vmatpush2.msra.mxu0 0.0
      %393 = vmatprep.subr.mxu0 0.0
      %394 = vmatpush2.msra.mxu0 0.0
      %395 = vmatprep.subr.mxu0 0.0
      %396 = vmatpush2.msra.mxu0 0.0
      %397 = vmatprep.subr.mxu0 0.0
      %398 = vmatpush2.msra.mxu0 0.0
      %399 = vmatprep.subr.mxu0 0.0
      %400 = vmatpush2.msra.mxu0 0.0
      %401 = vmatprep.subr.mxu0 0.0
      %402 = vmatpush2.msra.mxu0 0.0
      %403 = vmatprep.subr.mxu0 0.0
      %404 = vmatpush2.msra.mxu0 0.0
      %405 = vmatprep.subr.mxu0 0.0
      %406 = vmatpush2.msra.mxu0 0.0
      %407 = vmatprep.subr.mxu0 0.0
      %408 = vmatpush2.msra.mxu0 0.0
      %409 = vmatprep.mubr.f32.mxu0 0.0
      %410 = vmatmul.mubr.f32.gmra.mxu0 %v306
      %v411 = vpop.f32.mrf.mxu0
      %v412 = vadd.f32 0.0, %v411
      %v413 = vpop.f32.mrf.mxu0
      %414 = vmatprep.mubr.f32.mxu0 0.0
      %415 = vmatmul.mubr.f32.gmra.mxu0 %v307
      %v416 = vpop.f32.mrf.mxu0
      %v417 = vadd.f32 0.0, %v416
      %v418 = vpop.f32.mrf.mxu0
      %419 = vdwg.mxu0
      %420 = vmatprep.subr.mxu0 0.0
      %421 = vmatpush1.msra.mxu0 %v327
      %422 = vmatprep.subr.mxu0 0.0
      %423 = vmatpush1.msra.mxu0 %v326
      %424 = vmatprep.subr.mxu0 0.0
      %425 = vmatpush1.msra.mxu0 %v325
      %426 = vmatprep.subr.mxu0 0.0
      %427 = vmatpush1.msra.mxu0 %v324
      %428 = vmatprep.subr.mxu0 0.0
      %429 = vmatpush1.msra.mxu0 %v323
      %430 = vmatprep.subr.mxu0 0.0
      %431 = vmatpush1.msra.mxu0 %v322
      %432 = vmatprep.subr.mxu0 0.0
      %433 = vmatpush1.msra.mxu0 %v321
      %434 = vmatprep.subr.mxu0 0.0
      %435 = vmatpush1.msra.mxu0 %v320
      %436 = vmatprep.subr.mxu0 0.0
      %437 = vmatpush1.msra.mxu0 %v319
      %438 = vmatprep.subr.mxu0 0.0
      %439 = vmatpush1.msra.mxu0 %v318
      %440 = vmatprep.subr.mxu0 0.0
      %441 = vmatpush1.msra.mxu0 %v317
      %442 = vmatprep.subr.mxu0 0.0
      %443 = vmatpush1.msra.mxu0 %v316
      %444 = vmatprep.subr.mxu0 0.0
      %445 = vmatpush1.msra.mxu0 %v315
      %446 = vmatprep.subr.mxu0 0.0
      %447 = vmatpush1.msra.mxu0 %v314
      %448 = vmatprep.subr.mxu0 0.0
      %449 = vmatpush1.msra.mxu0 %v313
      %450 = vmatprep.subr.mxu0 0.0
      %451 = vmatpush1.msra.mxu0 %v312
      %452 = vmatprep.subr.mxu0 0.0
      %453 = vmatpush2.msra.mxu0 0.0
      %454 = vmatprep.subr.mxu0 0.0
      %455 = vmatpush2.msra.mxu0 0.0
      %456 = vmatprep.subr.mxu0 0.0
      %457 = vmatpush2.msra.mxu0 0.0
      %458 = vmatprep.subr.mxu0 0.0
      %459 = vmatpush2.msra.mxu0 0.0
      %460 = vmatprep.subr.mxu0 0.0
      %461 = vmatpush2.msra.mxu0 0.0
      %462 = vmatprep.subr.mxu0 0.0
      %463 = vmatpush2.msra.mxu0 0.0
      %464 = vmatprep.subr.mxu0 0.0
      %465 = vmatpush2.msra.mxu0 0.0
      %466 = vmatprep.subr.mxu0 0.0
      %467 = vmatpush2.msra.mxu0 0.0
      %468 = vmatprep.subr.mxu0 0.0
      %469 = vmatpush2.msra.mxu0 0.0
      %470 = vmatprep.subr.mxu0 0.0
      %471 = vmatpush2.msra.mxu0 0.0
      %472 = vmatprep.subr.mxu0 0.0
      %473 = vmatpush2.msra.mxu0 0.0
      %474 = vmatprep.subr.mxu0 0.0
      %475 = vmatpush2.msra.mxu0 0.0
      %476 = vmatprep.subr.mxu0 0.0
      %477 = vmatpush2.msra.mxu0 0.0
      %478 = vmatprep.subr.mxu0 0.0
      %479 = vmatpush2.msra.mxu0 0.0
      %480 = vmatprep.subr.mxu0 0.0
      %481 = vmatpush2.msra.mxu0 0.0
      %482 = vmatprep.subr.mxu0 0.0
      %483 = vmatpush2.msra.mxu0 0.0
      %484 = vmatprep.mubr.f32.mxu0 0.0
      %485 = vmatmul.mubr.f32.gmra.mxu0 %v310
      %v486 = vpop.f32.mrf.mxu0
      %v487 = vadd.f32 %v412, %v486
      %v488 = vpop.f32.mrf.mxu0
      %489 = vmatprep.mubr.f32.mxu0 0.0
      %490 = vmatmul.mubr.f32.gmra.mxu0 %v311
      %v491 = vpop.f32.mrf.mxu0
      %v492 = vadd.f32 %v417, %v491
      %v493 = vpop.f32.mrf.mxu0
      %494 = vdwg.mxu0
      %v495 = vld [vmem:[#allocation2 + $0x2] sm:$0xff]
      %v496 = vld [vmem:[#allocation2 + $0xa] sm:$0xff]
      %s497 = scalar_lea.vmem %s2, 256
      %v498 = vld [vmem:[%s497] sm:$0xff]
      %v499 = vld [vmem:[%s497 + $0x8] sm:$0xff]
      %v500 = vld [vmem:[%s497 + $0x10] sm:$0xff]
      %v501 = vld [vmem:[%s497 + $0x18] sm:$0xff]
      %v502 = vld [vmem:[%s497 + $0x20] sm:$0xff]
      %v503 = vld [vmem:[%s497 + $0x28] sm:$0xff]
      %v504 = vld [vmem:[%s497 + $0x30] sm:$0xff]
      %v505 = vld [vmem:[%s497 + $0x38] sm:$0xff]
      %v506 = vld [vmem:[%s497 + $0x40] sm:$0xff]
      %v507 = vld [vmem:[%s497 + $0x48] sm:$0xff]
      %v508 = vld [vmem:[%s497 + $0x50] sm:$0xff]
      %v509 = vld [vmem:[%s497 + $0x58] sm:$0xff]
      %v510 = vld [vmem:[%s497 + $0x60] sm:$0xff]
      %v511 = vld [vmem:[%s497 + $0x68] sm:$0xff]
      %v512 = vld [vmem:[%s497 + $0x70] sm:$0xff]
      %v513 = vld [vmem:[%s497 + $0x78] sm:$0xff]
      %514 = vmatprep.subr.mxu0 0.0
      %515 = vmatpush1.msra.mxu0 %v513
      %516 = vmatprep.subr.mxu0 0.0
      %517 = vmatpush1.msra.mxu0 %v512
      %518 = vmatprep.subr.mxu0 0.0
      %519 = vmatpush1.msra.mxu0 %v511
      %520 = vmatprep.subr.mxu0 0.0
      %521 = vmatpush1.msra.mxu0 %v510
      %522 = vmatprep.subr.mxu0 0.0
      %523 = vmatpush1.msra.mxu0 %v509
      %524 = vmatprep.subr.mxu0 0.0
      %525 = vmatpush1.msra.mxu0 %v508
      %526 = vmatprep.subr.mxu0 0.0
      %527 = vmatpush1.msra.mxu0 %v507
      %528 = vmatprep.subr.mxu0 0.0
      %529 = vmatpush1.msra.mxu0 %v506
      %530 = vmatprep.subr.mxu0 0.0
      %531 = vmatpush1.msra.mxu0 %v505
      %532 = vmatprep.subr.mxu0 0.0
      %533 = vmatpush1.msra.mxu0 %v504
      %534 = vmatprep.subr.mxu0 0.0
      %535 = vmatpush1.msra.mxu0 %v503
      %536 = vmatprep.subr.mxu0 0.0
      %537 = vmatpush1.msra.mxu0 %v502
      %538 = vmatprep.subr.mxu0 0.0
      %539 = vmatpush1.msra.mxu0 %v501
      %540 = vmatprep.subr.mxu0 0.0
      %541 = vmatpush1.msra.mxu0 %v500
      %542 = vmatprep.subr.mxu0 0.0
      %543 = vmatpush1.msra.mxu0 %v499
      %544 = vmatprep.subr.mxu0 0.0
      %545 = vmatpush1.msra.mxu0 %v498
      %546 = vmatprep.subr.mxu0 0.0
      %547 = vmatpush2.msra.mxu0 0.0
      %548 = vmatprep.subr.mxu0 0.0
      %549 = vmatpush2.msra.mxu0 0.0
      %550 = vmatprep.subr.mxu0 0.0
      %551 = vmatpush2.msra.mxu0 0.0
      %552 = vmatprep.subr.mxu0 0.0
      %553 = vmatpush2.msra.mxu0 0.0
      %554 = vmatprep.subr.mxu0 0.0
      %555 = vmatpush2.msra.mxu0 0.0
      %556 = vmatprep.subr.mxu0 0.0
      %557 = vmatpush2.msra.mxu0 0.0
      %558 = vmatprep.subr.mxu0 0.0
      %559 = vmatpush2.msra.mxu0 0.0
      %560 = vmatprep.subr.mxu0 0.0
      %561 = vmatpush2.msra.mxu0 0.0
      %562 = vmatprep.subr.mxu0 0.0
      %563 = vmatpush2.msra.mxu0 0.0
      %564 = vmatprep.subr.mxu0 0.0
      %565 = vmatpush2.msra.mxu0 0.0
      %566 = vmatprep.subr.mxu0 0.0
      %567 = vmatpush2.msra.mxu0 0.0
      %568 = vmatprep.subr.mxu0 0.0
      %569 = vmatpush2.msra.mxu0 0.0
      %570 = vmatprep.subr.mxu0 0.0
      %571 = vmatpush2.msra.mxu0 0.0
      %572 = vmatprep.subr.mxu0 0.0
      %573 = vmatpush2.msra.mxu0 0.0
      %574 = vmatprep.subr.mxu0 0.0
      %575 = vmatpush2.msra.mxu0 0.0
      %576 = vmatprep.subr.mxu0 0.0
      %577 = vmatpush2.msra.mxu0 0.0
      %578 = vmatprep.mubr.f32.mxu0 0.0
      %579 = vmatmul.mubr.f32.gmra.mxu0 %v495
      %v580 = vpop.f32.mrf.mxu0
      %v581 = vadd.f32 0.0, %v580
      %v582 = vpop.f32.mrf.mxu0
      %583 = vmatprep.mubr.f32.mxu0 0.0
      %584 = vmatmul.mubr.f32.gmra.mxu0 %v496
      %v585 = vpop.f32.mrf.mxu0
      %v586 = vadd.f32 0.0, %v585
      %v587 = vpop.f32.mrf.mxu0
      %588 = vdwg.mxu0
      %v589 = vadd.f32 %v487, %v581
      %v590 = vadd.f32 %v492, %v586
      %v591 = vlaneseq
      %v592 = vshrl.u32 %v591, 7
      %v593 = vsub.s32 2, %v592
      %v594 = vrot.slane %v200, %v593
      %v595 = vmul.f32 %v589, %v594
      %v596 = vmul.f32 %v590, %v594
      %v597 = vlaneseq
      %v598 = vshrl.u32 %v597, 7
      %v599 = vsub.s32 3, %v598
      %v600 = vrot.slane %v200, %v599
      %v601 = vadd.f32 %v595, %v600
      %v602 = vadd.f32 %v596, %v600
      %v603 = vadd.f32 %v601, %v201
      %v604 = vadd.f32 %v602, %v202
      %v605 = vmax.f32 %v603, 0.0
      %v606 = vmax.f32 %v604, 0.0
      %607 = vst [vmem:[%s197] sm:$0xff] %v605
      %608 = vst [vmem:[%s197 + $0x8] sm:$0xff] %v606
      %p609 = scmp.lt.s32.totalorder %s15, 1
      %s610 = scalar_select %p609, %s15, 1
      %s611 = smul.addr %s610, 2
      %s612 = smul.addr %s611, 8
      %s613 = scalar_lea.vmem %s4, %s612
      // Predicated region
      $region37: #{aster_block_pallas.1} parent=35 // pred_check
        %p614 = pneg %p122
      $region38: #{aster_block_pallas.1} parent=35 // pred_check_branch
        %616 = sbr.rel (%p614) target = $region40
      $region39: #{aster_block_pallas.1} parent=35 // pred_region
        _
      $region40: #{aster_block_pallas.1} parent=35 // pred_fallthru
        _
    $region36: #{aster_block_pallas.1} parent=5 // pred_fallthru
      _
    %p617 = scmp.le.s32.totalorder 2, %s10
    // Predicated region
    $region41: #{aster_block_pallas.1} parent=5 // pred_check
      %p618 = pneg %p617
    $region42: #{aster_block_pallas.1} parent=5 // pred_check_branch
      %620 = sbr.rel (%p618) target = $region44
    $region43: #{aster_block_pallas.1} parent=5 // pred_region
      %s621 = ssub.s32 %s10, 2
      // Predicated region
      $region45: #{aster_block_pallas.1} parent=43 // pred_check
        %p622 = pneg %p128
      $region46: #{aster_block_pallas.1} parent=43 // pred_check_branch
        %624 = sbr.rel (%p622) target = $region48
      $region47: #{aster_block_pallas.1} parent=43 // pred_region
        %p625 = scmp.lt.s32.totalorder %s16, 1
        %s626 = scalar_select %p625, %s16, 1
        %s627 = smul.addr %s626, 2
        %s628 = smul.addr %s627, 8
        %s629 = scalar_lea.vmem %s4, %s628
      $region48: #{aster_block_pallas.1} parent=43 // pred_fallthru
        _
    $region44: #{aster_block_pallas.1} parent=5 // pred_fallthru
      _
  $region6: #{aster_block_pallas.1} parent=0 // loop_footer
    %s14 = sadd.s32 1, %s10
  $region7: #{aster_block_pallas.1} parent=0 // loop_footer_branch
    %9 = sbr.rel target = $region3
  $region8: #{aster_block_pallas.1} parent=0 // loop_exit
    _

</llo_original>
